<compile_context>
chip_gen: v5e
topology: v5e:2x2
jax: 0.10.0
libtpu: 0.0.40
codegen_flags: <defaults>
</compile_context>

<pallas_src>
import functools

import jax
import jax.numpy as jnp
from jax.experimental import pallas as pl
from jax.experimental.pallas import tpu as pltpu


def _generator_kernel(x_ref, wih_ref, wcat_ref, b_ref, blin_ref, out_ref,
                      *, n_vars, batch, hidden_dim):
    H = hidden_dim

    # --- batched input projection for all time steps (one MXU call) ---------
    # (n_vars*batch, z_dim) @ (z_dim, 4H) + (b_ih + b_hh)
    xw = jnp.dot(x_ref[...], wih_ref[...],
                 preferred_element_type=jnp.float32) + b_ref[...]

    wcat = wcat_ref[...]      # (H, 4H + val_dim)  == [W_hh^T | W_lin^T]
    blin = blin_ref[...]      # (1, val_dim)

    c = jnp.zeros((batch, H), jnp.float32)
    rec = None                # h @ W_hh^T contribution carried to next step

    # --- fully unrolled recurrence (n_vars is small & static) ---------------
    # h/c/rec stay in vregs; one fused MXU push per step; static, sublane-
    # aligned slices for both the xw read and the out_ref store.
    for t in range(n_vars):
        gates = xw[t * batch:(t + 1) * batch, :]
        if t > 0:
            gates = gates + rec          # t == 0: h == 0 -> skip recurrent term

        # 2 full-vreg transcendentals instead of 4 quarter-width ones.
        sig = jax.nn.sigmoid(gates)
        tg = jnp.tanh(gates)
        # LSTMCell gate order: i, f, g, o
        i_g = sig[:, 0 * H:1 * H]
        f_g = sig[:, 1 * H:2 * H]
        g_g = tg[:, 2 * H:3 * H]
        o_g = sig[:, 3 * H:4 * H]

        c = f_g * c + i_g * g_g
        h = o_g * jnp.tanh(c)

        # Single fused matmul: recurrent half (:4H) for step t+1, output
        # projection (4H:) for step t.  Last step's recurrent half is unused.
        fused = jnp.dot(h, wcat, preferred_element_type=jnp.float32)
        rec = fused[:, :4 * H]
        out_ref[t * batch:(t + 1) * batch, :] = jnp.abs(fused[:, 4 * H:] + blin)


def generator_forward(x, params):
    """x: (n_vars, batch, z_dim) float32 -> (n_vars, batch, val_dim) float32."""
    n_vars, batch, z_dim = x.shape
    H = params["w_hh"].shape[1]
    val_dim = params["w_lin"].shape[0]

    # All layout plumbing happens in the wrapper (free for XLA, avoids
    # in-kernel relayouts).
    x2d = x.reshape(n_vars * batch, z_dim)                 # (n_vars*batch, z_dim)
    wih_t = params["w_ih"].T                               # (z_dim, 4H)
    w_cat = jnp.concatenate(                               # (H, 4H + val_dim)
        [params["w_hh"].T, params["w_lin"].T], axis=1)
    b = (params["b_ih"] + params["b_hh"])[None, :]         # (1, 4H)
    b_lin = params["b_lin"][None, :]                       # (1, val_dim)

    # Advisory cost hint for XLA's scheduler around the custom call.
    flops = (2 * n_vars * batch * z_dim * 4 * H            # input projection
             + n_vars * 2 * batch * H * (4 * H + val_dim)  # fused per-step matmul
             + n_vars * batch * (6 * H + 2 * val_dim))     # elementwise
    transcendentals = n_vars * batch * (4 * H + 4 * H + H) # sig(gates)+tanh(gates)+tanh(c)
    bytes_accessed = 4 * (x2d.size + wih_t.size + w_cat.size + b.size
                          + b_lin.size + n_vars * batch * val_dim)

    vmem_spec = pl.BlockSpec(memory_space=pltpu.MemorySpace.VMEM)

    out2d = pl.pallas_call(
        functools.partial(_generator_kernel,
                          n_vars=n_vars, batch=batch, hidden_dim=H),
        out_shape=jax.ShapeDtypeStruct((n_vars * batch, val_dim), jnp.float32),
        in_specs=[vmem_spec] * 5,
        out_specs=vmem_spec,
        cost_estimate=pl.CostEstimate(flops=flops,
                                      transcendentals=transcendentals,
                                      bytes_accessed=bytes_accessed),
    )(x2d, wih_t, w_cat, b, b_lin)

    return out2d.reshape(n_vars, batch, val_dim)


def generator_reference(x, params):
    """Pure-JAX reference matching torch.nn.LSTMCell + Linear + abs semantics."""
    n_vars, batch, _ = x.shape
    H = params["w_hh"].shape[1]
    h = jnp.zeros((batch, H), jnp.float32)
    c = jnp.zeros((batch, H), jnp.float32)
    outs = []
    for t in range(n_vars):
        gates = (x[t] @ params["w_ih"].T + params["b_ih"]
                 + h @ params["w_hh"].T + params["b_hh"])
        i_g = jax.nn.sigmoid(gates[:, 0 * H:1 * H])
        f_g = jax.nn.sigmoid(gates[:, 1 * H:2 * H])
        g_g = jnp.tanh(gates[:, 2 * H:3 * H])
        o_g = jax.nn.sigmoid(gates[:, 3 * H:4 * H])
        c = f_g * c + i_g * g_g
        h = o_g * jnp.tanh(c)
        outs.append(jnp.abs(h @ params["w_lin"].T + params["b_lin"]))
    return jnp.stack(outs, axis=0)


def init_params(key, hidden_dim, z_dim, val_dim):
    ks = jax.random.split(key, 6)
    bound = 1.0 / jnp.sqrt(hidden_dim)
    return {
        "w_ih": jax.random.uniform(ks[0], (4 * hidden_dim, z_dim), jnp.float32, -bound, bound),
        "w_hh": jax.random.uniform(ks[1], (4 * hidden_dim, hidden_dim), jnp.float32, -bound, bound),
        "b_ih": jax.random.uniform(ks[2], (4 * hidden_dim,), jnp.float32, -bound, bound),
        "b_hh": jax.random.uniform(ks[3], (4 * hidden_dim,), jnp.float32, -bound, bound),
        "w_lin": jax.random.uniform(ks[4], (val_dim, hidden_dim), jnp.float32, -bound, bound),
        "b_lin": jax.random.uniform(ks[5], (val_dim,), jnp.float32, -bound, bound),
    }


if __name__ == "__main__":
    hidden_dim, z_dim, val_dim, n_vars, batch = 32, 16, 8, 4, 8

    key = jax.random.PRNGKey(0)
    k_x, k_p = jax.random.split(key)
    x = jax.random.normal(k_x, (n_vars, batch, z_dim), jnp.float32)
    params = init_params(k_p, hidden_dim, z_dim, val_dim)

    out = generator_forward(x, params)
    out = jax.block_until_ready(out)

    ref = generator_reference(x, params)
    assert out.shape == (n_vars, batch, val_dim)
    assert jnp.allclose(out, ref, atol=1e-5, rtol=1e-5), "mismatch vs reference"

    print("KERNEL_OK")
</pallas_src>

<mosaic_0001>
module attributes {stable_mosaic.version = 11 : i64} {
  func.func @_generator_kernel(%arg0: memref<32x16xf32, #tpu.memory_space<vmem>>, %arg1: memref<16x128xf32, #tpu.memory_space<vmem>>, %arg2: memref<32x136xf32, #tpu.memory_space<vmem>>, %arg3: memref<1x128xf32, #tpu.memory_space<vmem>>, %arg4: memref<1x8xf32, #tpu.memory_space<vmem>>, %arg5: memref<32x8xf32, #tpu.memory_space<vmem>>) attributes {dimension_semantics = [], scalar_prefetch = 0 : i64, scratch_operands = 0 : i64, tpu.core_type = #tpu.core_type<tc>} {
    %c0 = arith.constant 0 : index
    %c0_0 = arith.constant 0 : index
    %0 = vector.load %arg0[%c0, %c0_0] : memref<32x16xf32, #tpu.memory_space<vmem>>, vector<32x16xf32>
    %c0_1 = arith.constant 0 : index
    %c0_2 = arith.constant 0 : index
    %1 = vector.load %arg1[%c0_1, %c0_2] : memref<16x128xf32, #tpu.memory_space<vmem>>, vector<16x128xf32>
    %cst = arith.constant dense<0.000000e+00> : vector<32x128xf32>
    %2 = tpu.matmul %0, %1, %cst {dimension_numbers = #tpu.dot_dimension_numbers<[1], [0], [0], [1], [0, 0, 1, 1], [], []>} : vector<32x16xf32>, vector<16x128xf32>, vector<32x128xf32> -> vector<32x128xf32>
    %c0_3 = arith.constant 0 : index
    %c0_4 = arith.constant 0 : index
    %3 = vector.load %arg3[%c0_3, %c0_4] : memref<1x128xf32, #tpu.memory_space<vmem>>, vector<1x128xf32>
    %4 = vector.broadcast %3 : vector<1x128xf32> to vector<32x128xf32>
    %5 = arith.addf %2, %4 : vector<32x128xf32>
    %c0_5 = arith.constant 0 : index
    %c0_6 = arith.constant 0 : index
    %6 = vector.load %arg2[%c0_5, %c0_6] : memref<32x136xf32, #tpu.memory_space<vmem>>, vector<32x136xf32>
    %c0_7 = arith.constant 0 : index
    %c0_8 = arith.constant 0 : index
    %7 = vector.load %arg4[%c0_7, %c0_8] : memref<1x8xf32, #tpu.memory_space<vmem>>, vector<1x8xf32>
    %cst_9 = arith.constant 0.000000e+00 : f32
    %8 = vector.broadcast %cst_9 : f32 to vector<8x32xf32>
    %9 = vector.extract_strided_slice %5 {offsets = [0, 0], sizes = [8, 128], strides = [1, 1]} : vector<32x128xf32> to vector<8x128xf32>
    %10 = arith.negf %9 : vector<8x128xf32>
    %11 = math.exp %10 : vector<8x128xf32>
    %cst_10 = arith.constant 1.000000e+00 : f32
    %12 = vector.broadcast %cst_10 : f32 to vector<8x128xf32>
    %13 = arith.addf %12, %11 : vector<8x128xf32>
    %14 = arith.divf %12, %13 : vector<8x128xf32>
    %15 = math.tanh %9 : vector<8x128xf32>
    %16 = vector.extract_strided_slice %14 {offsets = [0, 0], sizes = [8, 32], strides = [1, 1]} : vector<8x128xf32> to vector<8x32xf32>
    %17 = vector.extract_strided_slice %14 {offsets = [0, 32], sizes = [8, 32], strides = [1, 1]} : vector<8x128xf32> to vector<8x32xf32>
    %18 = vector.extract_strided_slice %15 {offsets = [0, 64], sizes = [8, 32], strides = [1, 1]} : vector<8x128xf32> to vector<8x32xf32>
    %19 = vector.extract_strided_slice %14 {offsets = [0, 96], sizes = [8, 32], strides = [1, 1]} : vector<8x128xf32> to vector<8x32xf32>
    %20 = arith.mulf %17, %8 : vector<8x32xf32>
    %21 = arith.mulf %16, %18 : vector<8x32xf32>
    %22 = arith.addf %20, %21 : vector<8x32xf32>
    %23 = math.tanh %22 : vector<8x32xf32>
    %24 = arith.mulf %19, %23 : vector<8x32xf32>
    %cst_11 = arith.constant dense<0.000000e+00> : vector<8x136xf32>
    %25 = tpu.matmul %24, %6, %cst_11 {dimension_numbers = #tpu.dot_dimension_numbers<[1], [0], [0], [1], [0, 0, 1, 1], [], []>} : vector<8x32xf32>, vector<32x136xf32>, vector<8x136xf32> -> vector<8x136xf32>
    %26 = vector.extract_strided_slice %25 {offsets = [0, 0], sizes = [8, 128], strides = [1, 1]} : vector<8x136xf32> to vector<8x128xf32>
    %27 = vector.extract_strided_slice %25 {offsets = [0, 128], sizes = [8, 8], strides = [1, 1]} : vector<8x136xf32> to vector<8x8xf32>
    %28 = vector.broadcast %7 : vector<1x8xf32> to vector<8x8xf32>
    %29 = arith.addf %27, %28 : vector<8x8xf32>
    %30 = math.absf %29 : vector<8x8xf32>
    %c0_12 = arith.constant 0 : index
    %c0_13 = arith.constant 0 : index
    %31 = vector.load %arg5[%c0_12, %c0_13] : memref<32x8xf32, #tpu.memory_space<vmem>>, vector<8x8xf32>
    tpu.vector_store %arg5[%c0_12, %c0_13], %30 {strides = array<i32>} : memref<32x8xf32, #tpu.memory_space<vmem>>, vector<8x8xf32>,
    %32 = vector.extract_strided_slice %5 {offsets = [8, 0], sizes = [8, 128], strides = [1, 1]} : vector<32x128xf32> to vector<8x128xf32>
    %33 = arith.addf %32, %26 : vector<8x128xf32>
    %34 = arith.negf %33 : vector<8x128xf32>
    %35 = math.exp %34 : vector<8x128xf32>
    %cst_14 = arith.constant 1.000000e+00 : f32
    %36 = vector.broadcast %cst_14 : f32 to vector<8x128xf32>
    %37 = arith.addf %36, %35 : vector<8x128xf32>
    %38 = arith.divf %36, %37 : vector<8x128xf32>
    %39 = math.tanh %33 : vector<8x128xf32>
    %40 = vector.extract_strided_slice %38 {offsets = [0, 0], sizes = [8, 32], strides = [1, 1]} : vector<8x128xf32> to vector<8x32xf32>
    %41 = vector.extract_strided_slice %38 {offsets = [0, 32], sizes = [8, 32], strides = [1, 1]} : vector<8x128xf32> to vector<8x32xf32>
    %42 = vector.extract_strided_slice %39 {offsets = [0, 64], sizes = [8, 32], strides = [1, 1]} : vector<8x128xf32> to vector<8x32xf32>
    %43 = vector.extract_strided_slice %38 {offsets = [0, 96], sizes = [8, 32], strides = [1, 1]} : vector<8x128xf32> to vector<8x32xf32>
    %44 = arith.mulf %41, %22 : vector<8x32xf32>
    %45 = arith.mulf %40, %42 : vector<8x32xf32>
    %46 = arith.addf %44, %45 : vector<8x32xf32>
    %47 = math.tanh %46 : vector<8x32xf32>
    %48 = arith.mulf %43, %47 : vector<8x32xf32>
    %cst_15 = arith.constant dense<0.000000e+00> : vector<8x136xf32>
    %49 = tpu.matmul %48, %6, %cst_15 {dimension_numbers = #tpu.dot_dimension_numbers<[1], [0], [0], [1], [0, 0, 1, 1], [], []>} : vector<8x32xf32>, vector<32x136xf32>, vector<8x136xf32> -> vector<8x136xf32>
    %50 = vector.extract_strided_slice %49 {offsets = [0, 0], sizes = [8, 128], strides = [1, 1]} : vector<8x136xf32> to vector<8x128xf32>
    %51 = vector.extract_strided_slice %49 {offsets = [0, 128], sizes = [8, 8], strides = [1, 1]} : vector<8x136xf32> to vector<8x8xf32>
    %52 = vector.broadcast %7 : vector<1x8xf32> to vector<8x8xf32>
    %53 = arith.addf %51, %52 : vector<8x8xf32>
    %54 = math.absf %53 : vector<8x8xf32>
    %c8 = arith.constant 8 : index
    %c0_16 = arith.constant 0 : index
    %55 = vector.load %arg5[%c8, %c0_16] : memref<32x8xf32, #tpu.memory_space<vmem>>, vector<8x8xf32>
    tpu.vector_store %arg5[%c8, %c0_16], %54 {strides = array<i32>} : memref<32x8xf32, #tpu.memory_space<vmem>>, vector<8x8xf32>,
    %56 = vector.extract_strided_slice %5 {offsets = [16, 0], sizes = [8, 128], strides = [1, 1]} : vector<32x128xf32> to vector<8x128xf32>
    %57 = arith.addf %56, %50 : vector<8x128xf32>
    %58 = arith.negf %57 : vector<8x128xf32>
    %59 = math.exp %58 : vector<8x128xf32>
    %cst_17 = arith.constant 1.000000e+00 : f32
    %60 = vector.broadcast %cst_17 : f32 to vector<8x128xf32>
    %61 = arith.addf %60, %59 : vector<8x128xf32>
    %62 = arith.divf %60, %61 : vector<8x128xf32>
    %63 = math.tanh %57 : vector<8x128xf32>
    %64 = vector.extract_strided_slice %62 {offsets = [0, 0], sizes = [8, 32], strides = [1, 1]} : vector<8x128xf32> to vector<8x32xf32>
    %65 = vector.extract_strided_slice %62 {offsets = [0, 32], sizes = [8, 32], strides = [1, 1]} : vector<8x128xf32> to vector<8x32xf32>
    %66 = vector.extract_strided_slice %63 {offsets = [0, 64], sizes = [8, 32], strides = [1, 1]} : vector<8x128xf32> to vector<8x32xf32>
    %67 = vector.extract_strided_slice %62 {offsets = [0, 96], sizes = [8, 32], strides = [1, 1]} : vector<8x128xf32> to vector<8x32xf32>
    %68 = arith.mulf %65, %46 : vector<8x32xf32>
    %69 = arith.mulf %64, %66 : vector<8x32xf32>
    %70 = arith.addf %68, %69 : vector<8x32xf32>
    %71 = math.tanh %70 : vector<8x32xf32>
    %72 = arith.mulf %67, %71 : vector<8x32xf32>
    %cst_18 = arith.constant dense<0.000000e+00> : vector<8x136xf32>
    %73 = tpu.matmul %72, %6, %cst_18 {dimension_numbers = #tpu.dot_dimension_numbers<[1], [0], [0], [1], [0, 0, 1, 1], [], []>} : vector<8x32xf32>, vector<32x136xf32>, vector<8x136xf32> -> vector<8x136xf32>
    %74 = vector.extract_strided_slice %73 {offsets = [0, 0], sizes = [8, 128], strides = [1, 1]} : vector<8x136xf32> to vector<8x128xf32>
    %75 = vector.extract_strided_slice %73 {offsets = [0, 128], sizes = [8, 8], strides = [1, 1]} : vector<8x136xf32> to vector<8x8xf32>
    %76 = vector.broadcast %7 : vector<1x8xf32> to vector<8x8xf32>
    %77 = arith.addf %75, %76 : vector<8x8xf32>
    %78 = math.absf %77 : vector<8x8xf32>
    %c16 = arith.constant 16 : index
    %c0_19 = arith.constant 0 : index
    %79 = vector.load %arg5[%c16, %c0_19] : memref<32x8xf32, #tpu.memory_space<vmem>>, vector<8x8xf32>
    tpu.vector_store %arg5[%c16, %c0_19], %78 {strides = array<i32>} : memref<32x8xf32, #tpu.memory_space<vmem>>, vector<8x8xf32>,
    %80 = vector.extract_strided_slice %5 {offsets = [24, 0], sizes = [8, 128], strides = [1, 1]} : vector<32x128xf32> to vector<8x128xf32>
    %81 = arith.addf %80, %74 : vector<8x128xf32>
    %82 = arith.negf %81 : vector<8x128xf32>
    %83 = math.exp %82 : vector<8x128xf32>
    %cst_20 = arith.constant 1.000000e+00 : f32
    %84 = vector.broadcast %cst_20 : f32 to vector<8x128xf32>
    %85 = arith.addf %84, %83 : vector<8x128xf32>
    %86 = arith.divf %84, %85 : vector<8x128xf32>
    %87 = math.tanh %81 : vector<8x128xf32>
    %88 = vector.extract_strided_slice %86 {offsets = [0, 0], sizes = [8, 32], strides = [1, 1]} : vector<8x128xf32> to vector<8x32xf32>
    %89 = vector.extract_strided_slice %86 {offsets = [0, 32], sizes = [8, 32], strides = [1, 1]} : vector<8x128xf32> to vector<8x32xf32>
    %90 = vector.extract_strided_slice %87 {offsets = [0, 64], sizes = [8, 32], strides = [1, 1]} : vector<8x128xf32> to vector<8x32xf32>
    %91 = vector.extract_strided_slice %86 {offsets = [0, 96], sizes = [8, 32], strides = [1, 1]} : vector<8x128xf32> to vector<8x32xf32>
    %92 = arith.mulf %89, %70 : vector<8x32xf32>
    %93 = arith.mulf %88, %90 : vector<8x32xf32>
    %94 = arith.addf %92, %93 : vector<8x32xf32>
    %95 = math.tanh %94 : vector<8x32xf32>
    %96 = arith.mulf %91, %95 : vector<8x32xf32>
    %cst_21 = arith.constant dense<0.000000e+00> : vector<8x136xf32>
    %97 = tpu.matmul %96, %6, %cst_21 {dimension_numbers = #tpu.dot_dimension_numbers<[1], [0], [0], [1], [0, 0, 1, 1], [], []>} : vector<8x32xf32>, vector<32x136xf32>, vector<8x136xf32> -> vector<8x136xf32>
    %98 = vector.extract_strided_slice %97 {offsets = [0, 128], sizes = [8, 8], strides = [1, 1]} : vector<8x136xf32> to vector<8x8xf32>
    %99 = vector.broadcast %7 : vector<1x8xf32> to vector<8x8xf32>
    %100 = arith.addf %98, %99 : vector<8x8xf32>
    %101 = math.absf %100 : vector<8x8xf32>
    %c24 = arith.constant 24 : index
    %c0_22 = arith.constant 0 : index
    %102 = vector.load %arg5[%c24, %c0_22] : memref<32x8xf32, #tpu.memory_space<vmem>>, vector<8x8xf32>
    tpu.vector_store %arg5[%c24, %c0_22], %101 {strides = array<i32>} : memref<32x8xf32, #tpu.memory_space<vmem>>, vector<8x8xf32>,
    return
  }
}

</mosaic_0001>

<llo_original>
// kernel: tpu_custom_call.1
$region0: #{tpu_custom_call.1}
  #allocation0 [shape = 'u32[]', space=smem, size = 0x4, offset = 0x4, fixed_abs, tag = 'smem constant byte address 0x4 - core index']
  #allocation1 [shape = 'u32[72,128]{1,0:T(1,128)}', space=vmem, size = 0x9000, scoped, tag = 'internal scratch']
  %s0 = inlined_call_operand.vmem [shape: f32[32,16], index: 0, kind: input, shape index: {}]
  %s1 = inlined_call_operand.vmem [shape: f32[16,128], index: 1, kind: input, shape index: {}]
  %s2 = inlined_call_operand.hbm [shape: f32[32,136], index: 2, kind: input, shape index: {}]
  %s3 = inlined_call_operand.vmem [shape: f32[1,128], index: 3, kind: input, shape index: {}]
  %s4 = inlined_call_operand.vmem [shape: f32[1,8], index: 4, kind: input, shape index: {}]
  %s5 = inlined_call_operand.vmem [shape: f32[32,8], index: 5, kind: output, shape index: {}]
  %s6 = sld [smem:[#allocation0]]
  $region34: #{tpu_custom_call.1} parent=0
    _
  %s8 = ssub.s32 1, %s6
  %s9 = scalar_select 0, %s8, %s6
  $region1: #{tpu_custom_call.1} parent=0
    #allocation2 [shape = 'u8[32768]{0}', space=vmem, size = 0x8000, scoped, tag = 'input window, operand 2, single buffered']
    #allocation3 [shape = 's32[1]{0}', space=sflag, size = 0x4, scoped, tag = 'scoped memory for tpu_custom_call.1']
    %10 = vsyncpa [#allocation3], 0
    // Predicated region
    $region2: #{tpu_custom_call.1} parent=1 // pred_check
      _
    $region3: #{tpu_custom_call.1} parent=1 // pred_check_branch
      %12 = sbr.rel (0) target = $region5
    $region4: #{tpu_custom_call.1} parent=1 // pred_region
      _
    $region5: #{tpu_custom_call.1} parent=1 // pred_fallthru
      _
    // Predicated region
    $region6: #{tpu_custom_call.1} parent=1 // pred_check
      _
    $region7: #{tpu_custom_call.1} parent=1 // pred_check_branch
      %14 = sbr.rel (0) target = $region9
    $region8: #{tpu_custom_call.1} parent=1 // pred_region
      _
    $region9: #{tpu_custom_call.1} parent=1 // pred_fallthru
      _
    // Predicated region
    $region10: #{tpu_custom_call.1} parent=1 // pred_check
      _
    $region11: #{tpu_custom_call.1} parent=1 // pred_check_branch
      %16 = sbr.rel (0) target = $region13
    $region12: #{tpu_custom_call.1} parent=1 // pred_region
      %18 = vsyncadd [#allocation3], 0
      %s19 = sshll.u32 %s2, 4
      %s20 = int_to_ptr.hbm [resolvable:$true] %s19
      %s21 = sshll.u32 [#allocation2], 4
      %s22 = int_to_ptr.vmem [resolvable:$true] %s21
      %27 = dma.hbm_to_vmem [thread:$0]  %s20, 1024, %s22, [#allocation3], 256, 256, 16
    $region13: #{tpu_custom_call.1} parent=1 // pred_fallthru
      _
    // Predicated region
    $region14: #{tpu_custom_call.1} parent=1 // pred_check
      _
    $region15: #{tpu_custom_call.1} parent=1 // pred_check_branch
      %29 = sbr.rel (0) target = $region17
    $region16: #{tpu_custom_call.1} parent=1 // pred_region
      _
    $region17: #{tpu_custom_call.1} parent=1 // pred_fallthru
      _
    // Predicated region
    $region18: #{tpu_custom_call.1} parent=1 // pred_check
      _
    $region19: #{tpu_custom_call.1} parent=1 // pred_check_branch
      %31 = sbr.rel (0) target = $region21
    $region20: #{tpu_custom_call.1} parent=1 // pred_region
      _
    $region21: #{tpu_custom_call.1} parent=1 // pred_fallthru
      _
    // Predicated region
    $region22: #{tpu_custom_call.1} parent=1 // pred_check
      _
    $region23: #{tpu_custom_call.1} parent=1 // pred_check_branch
      %33 = sbr.rel (0) target = $region25
    $region24: #{tpu_custom_call.1} parent=1 // pred_region
      %35 = dma.done [#allocation3], 1024
    $region25: #{tpu_custom_call.1} parent=1 // pred_fallthru
      _
    %v36 = vld [vmem:[%s0] sm:$0xff]
    %v37 = vld [vmem:[%s0 + $0x8] sm:$0xff]
    %v38 = vld [vmem:[%s0 + $0x10] sm:$0xff]
    %v39 = vld [vmem:[%s0 + $0x18] sm:$0xff]
    %v40 = vld [vmem:[%s1] sm:$0xff]
    %v41 = vld [vmem:[%s1 + $0x8] sm:$0xff]
    %v42 = vld [vmem:[%s3] sm:$0x1]
    %v44 = vperm.slane %v42, 0
    %vm46 = vcmask 130048
    %v48 = vsel %vm46, %v36, 0
    %v51 = vsel %vm46, %v37, 0
    %v54 = vsel %vm46, %v38, 0
    %v57 = vsel %vm46, %v39, 0
    %59 = vmatpush.msra.mxu0 0.0
    %60 = vmatpush.msra.mxu0 0.0
    %61 = vmatpush.msra.mxu0 0.0
    %62 = vmatpush.msra.mxu0 0.0
    %63 = vmatpush.msra.mxu0 0.0
    %64 = vmatpush.msra.mxu0 0.0
    %65 = vmatpush.msra.mxu0 0.0
    %66 = vmatpush.msra.mxu0 0.0
    %67 = vmatpush.msra.mxu0 0.0
    %68 = vmatpush.msra.mxu0 0.0
    %69 = vmatpush.msra.mxu0 0.0
    %70 = vmatpush.msra.mxu0 0.0
    %71 = vmatpush.msra.mxu0 0.0
    %72 = vmatpush.msra.mxu0 0.0
    %73 = vmatpush.msra.mxu0 %v41
    %74 = vmatpush.msra.mxu0 %v40
    %75 = vmatmul.f32.gmra.mxu0 %v48
    %v76 = vpop.f32.mrf.mxu0
    %v77 = vadd.f32 %v44, %v76
    %78 = vmatmul.f32.gmra.mxu0 %v51
    %v79 = vpop.f32.mrf.mxu0
    %v80 = vadd.f32 %v44, %v79
    %81 = vmatmul.f32.gmra.mxu0 %v54
    %v82 = vpop.f32.mrf.mxu0
    %v83 = vadd.f32 %v44, %v82
    %84 = vmatmul.f32.gmra.mxu0 %v57
    %v85 = vpop.f32.mrf.mxu0
    %v86 = vadd.f32 %v44, %v85
    %87 = vdwg.mxu0
    %v88 = vld [vmem:[#allocation2] sm:$0xff]
    %v89 = vld [vmem:[#allocation2 + $0x8] sm:$0xff]
    %v90 = vld [vmem:[#allocation2 + $0x10] sm:$0xff]
    %v91 = vld [vmem:[#allocation2 + $0x18] sm:$0xff]
    %v92 = vld [vmem:[#allocation2 + $0x20] sm:$0xff]
    %v93 = vld [vmem:[#allocation2 + $0x28] sm:$0xff]
    %v94 = vld [vmem:[#allocation2 + $0x30] sm:$0xff]
    %v95 = vld [vmem:[#allocation2 + $0x38] sm:$0xff]
    %v96 = vld [vmem:[%s4] sm:$0x1]
    %v97 = vxor.u32 %v77, 2147483648
    %v98 = vmul.f32 %v97, 1.442695
    %v99 = vpow.pop %v98
    %v100 = vadd.f32 %v99, 1.0
    %v101 = vrcp.pop %v100
    %v102 = vmul.f32 %v100, %v101
    %v103 = vsub.f32 1.0, %v102
    %v104 = vmul.f32 %v101, %v103
    %v105 = vadd.f32 %v101, %v104
    %vm106 = vweird.f32 %v100
    %vm107 = vweird.f32 %v101
    %vm108 = vmor %vm106, %vm107
    %v109 = vsel %vm108, %v101, %v105
    %v110 = vand.u32 2147483647, %v100
    %vm111 = vcmp.eq.f32.partialorder %v110, 8.507059e+37
    %v112 = vand.u32 %v100, 2147483648
    %v113 = vor.u32 1.1754944e-38, %v112
    %v114 = vsel %vm111, %v113, %v109
    %v115 = vmul.f32 1.0, %v114
    %v116 = vtanh.pop %v77
    %v117 = vmul.f32 %v115, 0.0
    %119 = vrot.lane.b32.xlu0 %v116, 64
    %v120 = vpop.permute.xlu0 %119
    %v122 = vmul.f32 %v115, %v120
    %124 = vrot.lane.b32.xlu0 %v122, 32
    %v125 = vpop.permute.xlu0 %124
    %v127 = vadd.f32 %v117, %v125
    %v128 = vtanh.pop %v127
    %130 = vrot.lane.b32.xlu0 %v128, 64
    %v131 = vpop.permute.xlu0 %130
    %v133 = vmul.f32 %v115, %v131
    %135 = vrot.lane.b32.xlu0 %v133, 32
    %v136 = vpop.permute.xlu0 %135
    %vm137 = vcmask 261120
    %v138 = vsel %vm137, %v136, 0
    %140 = vmatpush.msra.mxu0 0.0
    %141 = vmatpush.msra.mxu0 0.0
    %142 = vmatpush.msra.mxu0 0.0
    %143 = vmatpush.msra.mxu0 0.0
    %144 = vmatpush.msra.mxu0 0.0
    %145 = vmatpush.msra.mxu0 0.0
    %146 = vmatpush.msra.mxu0 0.0
    %147 = vmatpush.msra.mxu0 0.0
    %148 = vmatpush.msra.mxu0 0.0
    %149 = vmatpush.msra.mxu0 0.0
    %150 = vmatpush.msra.mxu0 0.0
    %151 = vmatpush.msra.mxu0 0.0
    %152 = vmatpush.msra.mxu0 %v94
    %153 = vmatpush.msra.mxu0 %v92
    %154 = vmatpush.msra.mxu0 %v90
    %155 = vmatpush.msra.mxu0 %v88
    %156 = vmatmul.f32.gmra.mxu0 %v138
    %v157 = vpop.f32.mrf.mxu0
    %v158 = vadd.f32 0.0, %v157
    %159 = vdwg.mxu0
    %160 = vmatpush.msra.mxu0 0.0
    %161 = vmatpush.msra.mxu0 0.0
    %162 = vmatpush.msra.mxu0 0.0
    %163 = vmatpush.msra.mxu0 0.0
    %164 = vmatpush.msra.mxu0 0.0
    %165 = vmatpush.msra.mxu0 0.0
    %166 = vmatpush.msra.mxu0 0.0
    %167 = vmatpush.msra.mxu0 0.0
    %168 = vmatpush.msra.mxu0 0.0
    %169 = vmatpush.msra.mxu0 0.0
    %170 = vmatpush.msra.mxu0 0.0
    %171 = vmatpush.msra.mxu0 0.0
    %172 = vmatpush.msra.mxu0 %v95
    %173 = vmatpush.msra.mxu0 %v93
    %174 = vmatpush.msra.mxu0 %v91
    %175 = vmatpush.msra.mxu0 %v89
    %176 = vmatmul.f32.gmra.mxu0 %v138
    %v177 = vpop.f32.mrf.mxu0
    %v178 = vadd.f32 0.0, %v177
    %179 = vdwg.mxu0
    %v181 = vperm.slane %v96, 0
    %v183 = vadd.f32 %v178, %v181
    %v184 = vand.u32 2147483647, %v183
    %vm185 = vcmask 64512
    %186 = vst.msk [vmem:[%s5] sm:$0xff] %vm185, %v184
    %v187 = vadd.f32 %v80, %v158
    %v188 = vxor.u32 %v187, 2147483648
    %v189 = vmul.f32 %v188, 1.442695
    %v190 = vpow.pop %v189
    %v191 = vadd.f32 %v190, 1.0
    %v192 = vrcp.pop %v191
    %v193 = vmul.f32 %v191, %v192
    %v194 = vsub.f32 1.0, %v193
    %v195 = vmul.f32 %v192, %v194
    %v196 = vadd.f32 %v192, %v195
    %vm197 = vweird.f32 %v191
    %vm198 = vweird.f32 %v192
    %vm199 = vmor %vm197, %vm198
    %v200 = vsel %vm199, %v192, %v196
    %v201 = vand.u32 2147483647, %v191
    %vm202 = vcmp.eq.f32.partialorder %v201, 8.507059e+37
    %v203 = vand.u32 %v191, 2147483648
    %v204 = vor.u32 1.1754944e-38, %v203
    %v205 = vsel %vm202, %v204, %v200
    %v206 = vmul.f32 1.0, %v205
    %v207 = vtanh.pop %v187
    %v208 = vmul.f32 %v206, %v127
    %210 = vrot.lane.b32.xlu0 %v207, 64
    %v211 = vpop.permute.xlu0 %210
    %v213 = vmul.f32 %v206, %v211
    %215 = vrot.lane.b32.xlu0 %v213, 32
    %v216 = vpop.permute.xlu0 %215
    %v218 = vadd.f32 %v208, %v216
    %v219 = vtanh.pop %v218
    %221 = vrot.lane.b32.xlu0 %v219, 64
    %v222 = vpop.permute.xlu0 %221
    %v224 = vmul.f32 %v206, %v222
    %226 = vrot.lane.b32.xlu0 %v224, 32
    %v227 = vpop.permute.xlu0 %226
    %v228 = vsel %vm137, %v227, 0
    %230 = vmatpush.msra.mxu0 0.0
    %231 = vmatpush.msra.mxu0 0.0
    %232 = vmatpush.msra.mxu0 0.0
    %233 = vmatpush.msra.mxu0 0.0
    %234 = vmatpush.msra.mxu0 0.0
    %235 = vmatpush.msra.mxu0 0.0
    %236 = vmatpush.msra.mxu0 0.0
    %237 = vmatpush.msra.mxu0 0.0
    %238 = vmatpush.msra.mxu0 0.0
    %239 = vmatpush.msra.mxu0 0.0
    %240 = vmatpush.msra.mxu0 0.0
    %241 = vmatpush.msra.mxu0 0.0
    %242 = vmatpush.msra.mxu0 %v94
    %243 = vmatpush.msra.mxu0 %v92
    %244 = vmatpush.msra.mxu0 %v90
    %245 = vmatpush.msra.mxu0 %v88
    %246 = vmatmul.f32.gmra.mxu0 %v228
    %v247 = vpop.f32.mrf.mxu0
    %v248 = vadd.f32 0.0, %v247
    %249 = vdwg.mxu0
    %250 = vmatpush.msra.mxu0 0.0
    %251 = vmatpush.msra.mxu0 0.0
    %252 = vmatpush.msra.mxu0 0.0
    %253 = vmatpush.msra.mxu0 0.0
    %254 = vmatpush.msra.mxu0 0.0
    %255 = vmatpush.msra.mxu0 0.0
    %256 = vmatpush.msra.mxu0 0.0
    %257 = vmatpush.msra.mxu0 0.0
    %258 = vmatpush.msra.mxu0 0.0
    %259 = vmatpush.msra.mxu0 0.0
    %260 = vmatpush.msra.mxu0 0.0
    %261 = vmatpush.msra.mxu0 0.0
    %262 = vmatpush.msra.mxu0 %v95
    %263 = vmatpush.msra.mxu0 %v93
    %264 = vmatpush.msra.mxu0 %v91
    %265 = vmatpush.msra.mxu0 %v89
    %266 = vmatmul.f32.gmra.mxu0 %v228
    %v267 = vpop.f32.mrf.mxu0
    %v268 = vadd.f32 0.0, %v267
    %269 = vdwg.mxu0
    %v270 = vadd.f32 %v268, %v181
    %v271 = vand.u32 2147483647, %v270
    %272 = vst.msk [vmem:[%s5 + $0x8] sm:$0xff] %vm185, %v271
    %v273 = vadd.f32 %v83, %v248
    %v274 = vxor.u32 %v273, 2147483648
    %v275 = vmul.f32 %v274, 1.442695
    %v276 = vpow.pop %v275
    %v277 = vadd.f32 %v276, 1.0
    %v278 = vrcp.pop %v277
    %v279 = vmul.f32 %v277, %v278
    %v280 = vsub.f32 1.0, %v279
    %v281 = vmul.f32 %v278, %v280
    %v282 = vadd.f32 %v278, %v281
    %vm283 = vweird.f32 %v277
    %vm284 = vweird.f32 %v278
    %vm285 = vmor %vm283, %vm284
    %v286 = vsel %vm285, %v278, %v282
    %v287 = vand.u32 2147483647, %v277
    %vm288 = vcmp.eq.f32.partialorder %v287, 8.507059e+37
    %v289 = vand.u32 %v277, 2147483648
    %v290 = vor.u32 1.1754944e-38, %v289
    %v291 = vsel %vm288, %v290, %v286
    %v292 = vmul.f32 1.0, %v291
    %v293 = vtanh.pop %v273
    %v294 = vmul.f32 %v292, %v218
    %296 = vrot.lane.b32.xlu0 %v293, 64
    %v297 = vpop.permute.xlu0 %296
    %v299 = vmul.f32 %v292, %v297
    %301 = vrot.lane.b32.xlu0 %v299, 32
    %v302 = vpop.permute.xlu0 %301
    %v304 = vadd.f32 %v294, %v302
    %v305 = vtanh.pop %v304
    %307 = vrot.lane.b32.xlu0 %v305, 64
    %v308 = vpop.permute.xlu0 %307
    %v310 = vmul.f32 %v292, %v308
    %312 = vrot.lane.b32.xlu0 %v310, 32
    %v313 = vpop.permute.xlu0 %312
    %v314 = vsel %vm137, %v313, 0
    %316 = vmatpush.msra.mxu0 0.0
    %317 = vmatpush.msra.mxu0 0.0
    %318 = vmatpush.msra.mxu0 0.0
    %319 = vmatpush.msra.mxu0 0.0
    %320 = vmatpush.msra.mxu0 0.0
    %321 = vmatpush.msra.mxu0 0.0
    %322 = vmatpush.msra.mxu0 0.0
    %323 = vmatpush.msra.mxu0 0.0
    %324 = vmatpush.msra.mxu0 0.0
    %325 = vmatpush.msra.mxu0 0.0
    %326 = vmatpush.msra.mxu0 0.0
    %327 = vmatpush.msra.mxu0 0.0
    %328 = vmatpush.msra.mxu0 %v94
    %329 = vmatpush.msra.mxu0 %v92
    %330 = vmatpush.msra.mxu0 %v90
    %331 = vmatpush.msra.mxu0 %v88
    %332 = vmatmul.f32.gmra.mxu0 %v314
    %v333 = vpop.f32.mrf.mxu0
    %v334 = vadd.f32 0.0, %v333
    %335 = vdwg.mxu0
    %336 = vmatpush.msra.mxu0 0.0
    %337 = vmatpush.msra.mxu0 0.0
    %338 = vmatpush.msra.mxu0 0.0
    %339 = vmatpush.msra.mxu0 0.0
    %340 = vmatpush.msra.mxu0 0.0
    %341 = vmatpush.msra.mxu0 0.0
    %342 = vmatpush.msra.mxu0 0.0
    %343 = vmatpush.msra.mxu0 0.0
    %344 = vmatpush.msra.mxu0 0.0
    %345 = vmatpush.msra.mxu0 0.0
    %346 = vmatpush.msra.mxu0 0.0
    %347 = vmatpush.msra.mxu0 0.0
    %348 = vmatpush.msra.mxu0 %v95
    %349 = vmatpush.msra.mxu0 %v93
    %350 = vmatpush.msra.mxu0 %v91
    %351 = vmatpush.msra.mxu0 %v89
    %352 = vmatmul.f32.gmra.mxu0 %v314
    %v353 = vpop.f32.mrf.mxu0
    %v354 = vadd.f32 0.0, %v353
    %355 = vdwg.mxu0
    %v356 = vadd.f32 %v354, %v181
    %v357 = vand.u32 2147483647, %v356
    %358 = vst.msk [vmem:[%s5 + $0x10] sm:$0xff] %vm185, %v357
    %v359 = vadd.f32 %v86, %v334
    %v360 = vxor.u32 %v359, 2147483648
    %v361 = vmul.f32 %v360, 1.442695
    %v362 = vpow.pop %v361
    %v363 = vadd.f32 %v362, 1.0
    %v364 = vrcp.pop %v363
    %v365 = vmul.f32 %v363, %v364
    %v366 = vsub.f32 1.0, %v365
    %v367 = vmul.f32 %v364, %v366
    %v368 = vadd.f32 %v364, %v367
    %vm369 = vweird.f32 %v363
    %vm370 = vweird.f32 %v364
    %vm371 = vmor %vm369, %vm370
    %v372 = vsel %vm371, %v364, %v368
    %v373 = vand.u32 2147483647, %v363
    %vm374 = vcmp.eq.f32.partialorder %v373, 8.507059e+37
    %v375 = vand.u32 %v363, 2147483648
    %v376 = vor.u32 1.1754944e-38, %v375
    %v377 = vsel %vm374, %v376, %v372
    %v378 = vmul.f32 1.0, %v377
    %v379 = vtanh.pop %v359
    %v380 = vmul.f32 %v378, %v304
    %382 = vrot.lane.b32.xlu0 %v379, 64
    %v383 = vpop.permute.xlu0 %382
    %v385 = vmul.f32 %v378, %v383
    %387 = vrot.lane.b32.xlu0 %v385, 32
    %v388 = vpop.permute.xlu0 %387
    %v390 = vadd.f32 %v380, %v388
    %v391 = vtanh.pop %v390
    %393 = vrot.lane.b32.xlu0 %v391, 64
    %v394 = vpop.permute.xlu0 %393
    %v396 = vmul.f32 %v378, %v394
    %398 = vrot.lane.b32.xlu0 %v396, 32
    %v399 = vpop.permute.xlu0 %398
    %v400 = vsel %vm137, %v399, 0
    %402 = vmatpush.msra.mxu0 0.0
    %403 = vmatpush.msra.mxu0 0.0
    %404 = vmatpush.msra.mxu0 0.0
    %405 = vmatpush.msra.mxu0 0.0
    %406 = vmatpush.msra.mxu0 0.0
    %407 = vmatpush.msra.mxu0 0.0
    %408 = vmatpush.msra.mxu0 0.0
    %409 = vmatpush.msra.mxu0 0.0
    %410 = vmatpush.msra.mxu0 0.0
    %411 = vmatpush.msra.mxu0 0.0
    %412 = vmatpush.msra.mxu0 0.0
    %413 = vmatpush.msra.mxu0 0.0
    %414 = vmatpush.msra.mxu0 %v95
    %415 = vmatpush.msra.mxu0 %v93
    %416 = vmatpush.msra.mxu0 %v91
    %417 = vmatpush.msra.mxu0 %v89
    %418 = vmatmul.f32.gmra.mxu0 %v400
    %v419 = vpop.f32.mrf.mxu0
    %v420 = vadd.f32 0.0, %v419
    %421 = vdwg.mxu0
    %v422 = vadd.f32 %v420, %v181
    %v423 = vand.u32 2147483647, %v422
    %424 = vst.msk [vmem:[%s5 + $0x18] sm:$0xff] %vm185, %v423
    // Predicated region
    $region26: #{tpu_custom_call.1} parent=1 // pred_check
      _
    $region27: #{tpu_custom_call.1} parent=1 // pred_check_branch
      %426 = sbr.rel (0) target = $region29
    $region28: #{tpu_custom_call.1} parent=1 // pred_region
      _
    $region29: #{tpu_custom_call.1} parent=1 // pred_fallthru
      _
    // Predicated region
    $region30: #{tpu_custom_call.1} parent=1 // pred_check
      _
    $region31: #{tpu_custom_call.1} parent=1 // pred_check_branch
      %428 = sbr.rel (0) target = $region33
    $region32: #{tpu_custom_call.1} parent=1 // pred_region
      _
    $region33: #{tpu_custom_call.1} parent=1 // pred_fallthru
      _
    %429 = vsyncpa [#allocation3], 1

</llo_original>
